<compile_context>
chip_gen: v5e
topology: v5e:2x2
jax: 0.10.0
libtpu: 0.0.40
codegen_flags: <defaults>
</compile_context>

<pallas_src>
import functools

import numpy as np
import jax
import jax.numpy as jnp
from jax.experimental import pallas as pl
from jax.experimental.pallas import tpu as pltpu


def _round_up(n, m):
    return ((n + m - 1) // m) * m


# ----------------------------------------------------------------------------
# Upsample-size schedule and bilinear interpolation operators (host precompute)
# ----------------------------------------------------------------------------

def calculate_upsample_sizes(input_shape, output_shape, number_of_layers):
    scale = (np.array(output_shape) / np.array(input_shape)) ** (1 / number_of_layers)
    upsample_sizes = [np.ceil(np.array(input_shape) * scale ** n).astype(int).tolist()
                      for n in range(1, number_of_layers)] + [list(output_shape)]
    return upsample_sizes


def bilinear_matrix(in_size, out_size):
    """1-D interpolation matrix matching nn.Upsample(mode='bilinear',
    align_corners=False): out = R @ in  along one axis."""
    R = np.zeros((out_size, in_size), dtype=np.float32)
    scale = in_size / out_size
    for i in range(out_size):
        src = max((i + 0.5) * scale - 0.5, 0.0)
        i0 = min(int(np.floor(src)), in_size - 1)
        i1 = min(i0 + 1, in_size - 1)
        w1 = src - i0
        R[i, i0] += 1.0 - w1
        R[i, i1] += w1
    return R


# ----------------------------------------------------------------------------
# Fused whole-network Pallas kernel (everything resident in VMEM)
# ----------------------------------------------------------------------------

def _fused_decoder_kernel(*refs, num_layers, eps):
    # ref layout: x, conv_w[0..L-1], R[0..L-1], w_final_T, gammas, betas, out
    x_ref = refs[0]
    w_refs = refs[1:1 + num_layers]
    r_refs = refs[1 + num_layers:1 + 2 * num_layers]
    wfinT_ref = refs[1 + 2 * num_layers]
    gamma_ref = refs[2 + 2 * num_layers]
    beta_ref = refs[3 + 2 * num_layers]
    o_ref = refs[4 + 2 * num_layers]

    x = x_ref[...]                                    # (HW0, C_pad)
    for i in range(num_layers):
        # 1x1 conv (no bias) == channel matmul on the MXU (at low resolution).
        y = jnp.dot(x, w_refs[i][...], preferred_element_type=jnp.float32)
        # Bilinear upsample (align_corners=False) as one MXU matmul with the
        # precomputed kron(Rh, Rw) interpolation operator.
        y = jnp.dot(r_refs[i][...], y, preferred_element_type=jnp.float32)
        # ReLU
        y = jnp.maximum(y, 0.0)
        # BatchNorm2d, train-mode batch statistics (N=1): per-channel mean /
        # biased variance over all pixels, single reduction pass per stat.
        # Affine + normalization folded into one per-channel scale/shift so
        # the per-pixel work is a single FMA.
        inv_n = 1.0 / y.shape[0]
        mean = jnp.sum(y, axis=0, keepdims=True) * inv_n
        var = jnp.sum(y * y, axis=0, keepdims=True) * inv_n - mean * mean
        var = jnp.maximum(var, 0.0)                   # guard float cancellation
        scale = jax.lax.rsqrt(var + eps) * gamma_ref[i]      # (1, C_pad)
        shift = beta_ref[i] - mean * scale                   # (1, C_pad)
        x = y * scale + shift

    # ReflectionPad2d((0,0,0,0)) is the identity.
    # Final 1x1 conv: contract channels of both operands (rhs-transposed
    # matmul) so the result is lane-dense (out_ch_pad, H*W).
    z = jax.lax.dot_general(wfinT_ref[...], x, (((1,), (1,)), ((), ())),
                            preferred_element_type=jnp.float32)
    # Numerically stable sigmoid: only exponentiate non-positive values.
    ez = jnp.exp(-jnp.abs(z))
    o_ref[...] = jnp.where(z >= 0.0, 1.0 / (1.0 + ez), ez / (1.0 + ez))


# ----------------------------------------------------------------------------
# DeepDecoder model (deterministic in-script parameter init)
# ----------------------------------------------------------------------------

class DeepDecoderPallas:
    def __init__(self, input_shape, image_dimensions, number_of_layers,
                 number_of_hidden_channels, key):
        self.input_shape = [1, number_of_hidden_channels] + list(input_shape)
        self.image_dimensions = list(image_dimensions[:2])
        self.number_of_layers = number_of_layers
        self.C = number_of_hidden_channels
        self.out_channels = image_dimensions[2]
        self.upsample_sizes = calculate_upsample_sizes(
            list(input_shape), self.image_dimensions, number_of_layers)

        # Lane-dense padded layouts: channels -> 128-lane multiple,
        # output channels -> sublane multiple of 8.
        self.C_pad = _round_up(self.C, 128)
        self.out_pad = _round_up(self.out_channels, 8)

        keys = jax.random.split(key, number_of_layers + 1)
        # 1x1 conv weights stored as (Cin, Cout), zero-padded to (C_pad, C_pad)
        # so every MXU operand is (8,128)-aligned; padded channels stay zero
        # through conv/ReLU/BN by construction.
        conv_ws = []
        for i in range(number_of_layers):
            w = jax.random.normal(keys[i], (self.C, self.C), jnp.float32) * 0.1
            wp = jnp.zeros((self.C_pad, self.C_pad), jnp.float32)
            conv_ws.append(wp.at[:self.C, :self.C].set(w))
        self.conv_weights = conv_ws

        wf = jax.random.normal(keys[-1], (self.C, self.out_channels), jnp.float32) * 0.1
        # Stored transposed (out_pad, C_pad) so the final matmul writes a
        # lane-dense (out_pad, H*W) result.
        self.final_weight_T = (jnp.zeros((self.out_pad, self.C_pad), jnp.float32)
                               .at[:self.out_channels, :self.C].set(wf.T))

        # BatchNorm affine params at PyTorch init (gamma=1, beta=0). Padded
        # channels get gamma=0 so they stay exactly zero through every layer.
        g = np.zeros((number_of_layers, 1, self.C_pad), np.float32)
        g[:, :, :self.C] = 1.0
        self.gammas = jnp.asarray(g)
        self.betas = jnp.zeros((number_of_layers, 1, self.C_pad), jnp.float32)

        # Precomputed separable-bilinear kron operators, one per layer
        # (hoisted out of the forward; small spatial sizes -> kron form avoids
        # the in-kernel relayout of a two-pass separable resize).
        cur = [int(input_shape[0]), int(input_shape[1])]
        r_mats = []
        for size in self.upsample_sizes:
            rh = bilinear_matrix(cur[0], int(size[0]))
            rw = bilinear_matrix(cur[1], int(size[1]))
            r_mats.append(jnp.asarray(np.kron(rh, rw)))   # (hout*wout, hin*win)
            cur = [int(size[0]), int(size[1])]
        self.r_mats = r_mats

        self._forward = jax.jit(self._build_forward())

    def _build_forward(self):
        num_layers = self.number_of_layers
        C_pad = self.C_pad
        out_ch = self.out_channels
        out_pad = self.out_pad
        hh, ww = self.image_dimensions
        hw_out = hh * ww
        eps = 1e-5

        n_inputs = 1 + 2 * num_layers + 3
        vmem = pl.BlockSpec(memory_space=pltpu.MemorySpace.VMEM)
        fused = pl.pallas_call(
            functools.partial(_fused_decoder_kernel,
                              num_layers=num_layers, eps=eps),
            out_shape=jax.ShapeDtypeStruct((out_pad, hw_out), jnp.float32),
            in_specs=[vmem] * n_inputs,
            out_specs=vmem,
        )
        # TODO(synk): at realistic sizes (e.g. 512x512, C>=128) switch this
        # whole-array-in-VMEM call to a gridded BlockSpec over H*W (tiles sized
        # against v7x's 64 MiB VMEM, "parallel" pixel axis for 2 TCs) and a
        # two-pass separable resize instead of the kron operator.

        def forward(x_nchw, conv_ws, r_mats, w_finT, gammas, betas):
            _, c, h, w = x_nchw.shape
            # NCHW (N=1) -> (H*W, C) pixels-on-sublanes / channels-on-lanes,
            # zero-padded to the 128-lane width.
            x = jnp.transpose(x_nchw[0], (1, 2, 0)).reshape(h * w, c)
            x = jnp.pad(x, ((0, 0), (0, C_pad - c)))
            out = fused(x, *conv_ws, *r_mats, w_finT, gammas, betas)
            # (out_pad, H*W) -> (out_ch, H, W), matching the PyTorch reshape.
            return out[:out_ch].reshape(out_ch, hh, ww)

        return forward

    def __call__(self, x_nchw):
        return self._forward(x_nchw, self.conv_weights, self.r_mats,
                             self.final_weight_T, self.gammas, self.betas)


# ----------------------------------------------------------------------------

if __name__ == "__main__":
    key = jax.random.PRNGKey(0)
    k_param, k_input = jax.random.split(key)

    input_shape = [4, 4]                 # latent spatial size
    image_dimensions = [16, 16, 3]       # H, W, output channels
    number_of_layers = 3
    number_of_hidden_channels = 16

    model = DeepDecoderPallas(input_shape, image_dimensions, number_of_layers,
                              number_of_hidden_channels, k_param)

    x = jax.random.normal(
        k_input, (1, number_of_hidden_channels, input_shape[0], input_shape[1]),
        jnp.float32)

    out = model(x)
    out = jax.block_until_ready(out)

    assert out.shape == (image_dimensions[2], image_dimensions[0], image_dimensions[1])
    assert bool(jnp.all(jnp.isfinite(out)))
    assert bool(jnp.all((out >= 0.0) & (out <= 1.0)))   # sigmoid range
    print("KERNEL_OK")
</pallas_src>

<mosaic_0001>
module attributes {stable_mosaic.version = 11 : i64} {
  func.func @_fused_decoder_kernel(%arg0: memref<16x128xf32, #tpu.memory_space<vmem>>, %arg1: memref<128x128xf32, #tpu.memory_space<vmem>>, %arg2: memref<128x128xf32, #tpu.memory_space<vmem>>, %arg3: memref<128x128xf32, #tpu.memory_space<vmem>>, %arg4: memref<49x16xf32, #tpu.memory_space<vmem>>, %arg5: memref<121x49xf32, #tpu.memory_space<vmem>>, %arg6: memref<256x121xf32, #tpu.memory_space<vmem>>, %arg7: memref<8x128xf32, #tpu.memory_space<vmem>>, %arg8: memref<3x1x128xf32, #tpu.memory_space<vmem>>, %arg9: memref<3x1x128xf32, #tpu.memory_space<vmem>>, %arg10: memref<8x256xf32, #tpu.memory_space<vmem>>) attributes {dimension_semantics = [], scalar_prefetch = 0 : i64, scratch_operands = 0 : i64, tpu.core_type = #tpu.core_type<tc>} {
    %c0 = arith.constant 0 : index
    %c0_0 = arith.constant 0 : index
    %0 = vector.load %arg0[%c0, %c0_0] : memref<16x128xf32, #tpu.memory_space<vmem>>, vector<16x128xf32>
    %c0_1 = arith.constant 0 : index
    %c0_2 = arith.constant 0 : index
    %1 = vector.load %arg1[%c0_1, %c0_2] : memref<128x128xf32, #tpu.memory_space<vmem>>, vector<128x128xf32>
    %cst = arith.constant dense<0.000000e+00> : vector<16x128xf32>
    %2 = tpu.matmul %0, %1, %cst {dimension_numbers = #tpu.dot_dimension_numbers<[1], [0], [0], [1], [0, 0, 1, 1], [], []>} : vector<16x128xf32>, vector<128x128xf32>, vector<16x128xf32> -> vector<16x128xf32>
    %c0_3 = arith.constant 0 : index
    %c0_4 = arith.constant 0 : index
    %3 = vector.load %arg4[%c0_3, %c0_4] : memref<49x16xf32, #tpu.memory_space<vmem>>, vector<49x16xf32>
    %cst_5 = arith.constant dense<0.000000e+00> : vector<49x128xf32>
    %4 = tpu.matmul %3, %2, %cst_5 {dimension_numbers = #tpu.dot_dimension_numbers<[1], [0], [0], [1], [0, 0, 1, 1], [], []>} : vector<49x16xf32>, vector<16x128xf32>, vector<49x128xf32> -> vector<49x128xf32>
    %cst_6 = arith.constant 0.000000e+00 : f32
    %5 = vector.broadcast %cst_6 : f32 to vector<49x128xf32>
    %6 = arith.maximumf %4, %5 : vector<49x128xf32>
    %cst_7 = arith.constant dense<0.000000e+00> : vector<128xf32>
    %7 = vector.multi_reduction <add>, %6, %cst_7 [0] : vector<49x128xf32> to vector<128xf32>
    %8 = vector.shape_cast %7 : vector<128xf32> to vector<1x128xf32>
    %cst_8 = arith.constant 0.0204081628 : f32
    %9 = vector.broadcast %cst_8 : f32 to vector<1x128xf32>
    %10 = arith.mulf %8, %9 : vector<1x128xf32>
    %11 = arith.mulf %6, %6 : vector<49x128xf32>
    %cst_9 = arith.constant dense<0.000000e+00> : vector<128xf32>
    %12 = vector.multi_reduction <add>, %11, %cst_9 [0] : vector<49x128xf32> to vector<128xf32>
    %13 = vector.shape_cast %12 : vector<128xf32> to vector<1x128xf32>
    %cst_10 = arith.constant 0.0204081628 : f32
    %14 = vector.broadcast %cst_10 : f32 to vector<1x128xf32>
    %15 = arith.mulf %13, %14 : vector<1x128xf32>
    %16 = arith.mulf %10, %10 : vector<1x128xf32>
    %17 = arith.subf %15, %16 : vector<1x128xf32>
    %cst_11 = arith.constant 0.000000e+00 : f32
    %18 = vector.broadcast %cst_11 : f32 to vector<1x128xf32>
    %19 = arith.maximumf %17, %18 : vector<1x128xf32>
    %cst_12 = arith.constant 9.99999974E-6 : f32
    %20 = vector.broadcast %cst_12 : f32 to vector<1x128xf32>
    %21 = arith.addf %19, %20 : vector<1x128xf32>
    %22 = math.rsqrt %21 : vector<1x128xf32>
    %c0_13 = arith.constant 0 : index
    %c0_14 = arith.constant 0 : index
    %c0_15 = arith.constant 0 : index
    %23 = vector.load %arg8[%c0_13, %c0_14, %c0_15] : memref<3x1x128xf32, #tpu.memory_space<vmem>>, vector<1x1x128xf32>
    %24 = vector.shape_cast %23 : vector<1x1x128xf32> to vector<1x128xf32>
    %25 = arith.mulf %22, %24 : vector<1x128xf32>
    %c0_16 = arith.constant 0 : index
    %c0_17 = arith.constant 0 : index
    %c0_18 = arith.constant 0 : index
    %26 = vector.load %arg9[%c0_16, %c0_17, %c0_18] : memref<3x1x128xf32, #tpu.memory_space<vmem>>, vector<1x1x128xf32>
    %27 = vector.shape_cast %26 : vector<1x1x128xf32> to vector<1x128xf32>
    %28 = arith.mulf %10, %25 : vector<1x128xf32>
    %29 = arith.subf %27, %28 : vector<1x128xf32>
    %30 = vector.broadcast %25 : vector<1x128xf32> to vector<49x128xf32>
    %31 = arith.mulf %6, %30 : vector<49x128xf32>
    %32 = vector.broadcast %29 : vector<1x128xf32> to vector<49x128xf32>
    %33 = arith.addf %31, %32 : vector<49x128xf32>
    %c0_19 = arith.constant 0 : index
    %c0_20 = arith.constant 0 : index
    %34 = vector.load %arg2[%c0_19, %c0_20] : memref<128x128xf32, #tpu.memory_space<vmem>>, vector<128x128xf32>
    %cst_21 = arith.constant dense<0.000000e+00> : vector<49x128xf32>
    %35 = tpu.matmul %33, %34, %cst_21 {dimension_numbers = #tpu.dot_dimension_numbers<[1], [0], [0], [1], [0, 0, 1, 1], [], []>} : vector<49x128xf32>, vector<128x128xf32>, vector<49x128xf32> -> vector<49x128xf32>
    %c0_22 = arith.constant 0 : index
    %c0_23 = arith.constant 0 : index
    %36 = vector.load %arg5[%c0_22, %c0_23] : memref<121x49xf32, #tpu.memory_space<vmem>>, vector<121x49xf32>
    %cst_24 = arith.constant dense<0.000000e+00> : vector<121x128xf32>
    %37 = tpu.matmul %36, %35, %cst_24 {dimension_numbers = #tpu.dot_dimension_numbers<[1], [0], [0], [1], [0, 0, 1, 1], [], []>} : vector<121x49xf32>, vector<49x128xf32>, vector<121x128xf32> -> vector<121x128xf32>
    %cst_25 = arith.constant 0.000000e+00 : f32
    %38 = vector.broadcast %cst_25 : f32 to vector<121x128xf32>
    %39 = arith.maximumf %37, %38 : vector<121x128xf32>
    %cst_26 = arith.constant dense<0.000000e+00> : vector<128xf32>
    %40 = vector.multi_reduction <add>, %39, %cst_26 [0] : vector<121x128xf32> to vector<128xf32>
    %41 = vector.shape_cast %40 : vector<128xf32> to vector<1x128xf32>
    %cst_27 = arith.constant 0.00826446246 : f32
    %42 = vector.broadcast %cst_27 : f32 to vector<1x128xf32>
    %43 = arith.mulf %41, %42 : vector<1x128xf32>
    %44 = arith.mulf %39, %39 : vector<121x128xf32>
    %cst_28 = arith.constant dense<0.000000e+00> : vector<128xf32>
    %45 = vector.multi_reduction <add>, %44, %cst_28 [0] : vector<121x128xf32> to vector<128xf32>
    %46 = vector.shape_cast %45 : vector<128xf32> to vector<1x128xf32>
    %cst_29 = arith.constant 0.00826446246 : f32
    %47 = vector.broadcast %cst_29 : f32 to vector<1x128xf32>
    %48 = arith.mulf %46, %47 : vector<1x128xf32>
    %49 = arith.mulf %43, %43 : vector<1x128xf32>
    %50 = arith.subf %48, %49 : vector<1x128xf32>
    %cst_30 = arith.constant 0.000000e+00 : f32
    %51 = vector.broadcast %cst_30 : f32 to vector<1x128xf32>
    %52 = arith.maximumf %50, %51 : vector<1x128xf32>
    %cst_31 = arith.constant 9.99999974E-6 : f32
    %53 = vector.broadcast %cst_31 : f32 to vector<1x128xf32>
    %54 = arith.addf %52, %53 : vector<1x128xf32>
    %55 = math.rsqrt %54 : vector<1x128xf32>
    %c1 = arith.constant 1 : index
    %c0_32 = arith.constant 0 : index
    %c0_33 = arith.constant 0 : index
    %56 = vector.load %arg8[%c1, %c0_32, %c0_33] : memref<3x1x128xf32, #tpu.memory_space<vmem>>, vector<1x1x128xf32>
    %57 = vector.shape_cast %56 : vector<1x1x128xf32> to vector<1x128xf32>
    %58 = arith.mulf %55, %57 : vector<1x128xf32>
    %c1_34 = arith.constant 1 : index
    %c0_35 = arith.constant 0 : index
    %c0_36 = arith.constant 0 : index
    %59 = vector.load %arg9[%c1_34, %c0_35, %c0_36] : memref<3x1x128xf32, #tpu.memory_space<vmem>>, vector<1x1x128xf32>
    %60 = vector.shape_cast %59 : vector<1x1x128xf32> to vector<1x128xf32>
    %61 = arith.mulf %43, %58 : vector<1x128xf32>
    %62 = arith.subf %60, %61 : vector<1x128xf32>
    %63 = vector.broadcast %58 : vector<1x128xf32> to vector<121x128xf32>
    %64 = arith.mulf %39, %63 : vector<121x128xf32>
    %65 = vector.broadcast %62 : vector<1x128xf32> to vector<121x128xf32>
    %66 = arith.addf %64, %65 : vector<121x128xf32>
    %c0_37 = arith.constant 0 : index
    %c0_38 = arith.constant 0 : index
    %67 = vector.load %arg3[%c0_37, %c0_38] : memref<128x128xf32, #tpu.memory_space<vmem>>, vector<128x128xf32>
    %cst_39 = arith.constant dense<0.000000e+00> : vector<121x128xf32>
    %68 = tpu.matmul %66, %67, %cst_39 {dimension_numbers = #tpu.dot_dimension_numbers<[1], [0], [0], [1], [0, 0, 1, 1], [], []>} : vector<121x128xf32>, vector<128x128xf32>, vector<121x128xf32> -> vector<121x128xf32>
    %c0_40 = arith.constant 0 : index
    %c0_41 = arith.constant 0 : index
    %69 = vector.load %arg6[%c0_40, %c0_41] : memref<256x121xf32, #tpu.memory_space<vmem>>, vector<256x121xf32>
    %cst_42 = arith.constant dense<0.000000e+00> : vector<256x128xf32>
    %70 = tpu.matmul %69, %68, %cst_42 {dimension_numbers = #tpu.dot_dimension_numbers<[1], [0], [0], [1], [0, 0, 1, 1], [], []>} : vector<256x121xf32>, vector<121x128xf32>, vector<256x128xf32> -> vector<256x128xf32>
    %cst_43 = arith.constant 0.000000e+00 : f32
    %71 = vector.broadcast %cst_43 : f32 to vector<256x128xf32>
    %72 = arith.maximumf %70, %71 : vector<256x128xf32>
    %cst_44 = arith.constant dense<0.000000e+00> : vector<128xf32>
    %73 = vector.multi_reduction <add>, %72, %cst_44 [0] : vector<256x128xf32> to vector<128xf32>
    %74 = vector.shape_cast %73 : vector<128xf32> to vector<1x128xf32>
    %cst_45 = arith.constant 3.906250e-03 : f32
    %75 = vector.broadcast %cst_45 : f32 to vector<1x128xf32>
    %76 = arith.mulf %74, %75 : vector<1x128xf32>
    %77 = arith.mulf %72, %72 : vector<256x128xf32>
    %cst_46 = arith.constant dense<0.000000e+00> : vector<128xf32>
    %78 = vector.multi_reduction <add>, %77, %cst_46 [0] : vector<256x128xf32> to vector<128xf32>
    %79 = vector.shape_cast %78 : vector<128xf32> to vector<1x128xf32>
    %cst_47 = arith.constant 3.906250e-03 : f32
    %80 = vector.broadcast %cst_47 : f32 to vector<1x128xf32>
    %81 = arith.mulf %79, %80 : vector<1x128xf32>
    %82 = arith.mulf %76, %76 : vector<1x128xf32>
    %83 = arith.subf %81, %82 : vector<1x128xf32>
    %cst_48 = arith.constant 0.000000e+00 : f32
    %84 = vector.broadcast %cst_48 : f32 to vector<1x128xf32>
    %85 = arith.maximumf %83, %84 : vector<1x128xf32>
    %cst_49 = arith.constant 9.99999974E-6 : f32
    %86 = vector.broadcast %cst_49 : f32 to vector<1x128xf32>
    %87 = arith.addf %85, %86 : vector<1x128xf32>
    %88 = math.rsqrt %87 : vector<1x128xf32>
    %c2 = arith.constant 2 : index
    %c0_50 = arith.constant 0 : index
    %c0_51 = arith.constant 0 : index
    %89 = vector.load %arg8[%c2, %c0_50, %c0_51] : memref<3x1x128xf32, #tpu.memory_space<vmem>>, vector<1x1x128xf32>
    %90 = vector.shape_cast %89 : vector<1x1x128xf32> to vector<1x128xf32>
    %91 = arith.mulf %88, %90 : vector<1x128xf32>
    %c2_52 = arith.constant 2 : index
    %c0_53 = arith.constant 0 : index
    %c0_54 = arith.constant 0 : index
    %92 = vector.load %arg9[%c2_52, %c0_53, %c0_54] : memref<3x1x128xf32, #tpu.memory_space<vmem>>, vector<1x1x128xf32>
    %93 = vector.shape_cast %92 : vector<1x1x128xf32> to vector<1x128xf32>
    %94 = arith.mulf %76, %91 : vector<1x128xf32>
    %95 = arith.subf %93, %94 : vector<1x128xf32>
    %96 = vector.broadcast %91 : vector<1x128xf32> to vector<256x128xf32>
    %97 = arith.mulf %72, %96 : vector<256x128xf32>
    %98 = vector.broadcast %95 : vector<1x128xf32> to vector<256x128xf32>
    %99 = arith.addf %97, %98 : vector<256x128xf32>
    %c0_55 = arith.constant 0 : index
    %c0_56 = arith.constant 0 : index
    %100 = vector.load %arg7[%c0_55, %c0_56] : memref<8x128xf32, #tpu.memory_space<vmem>>, vector<8x128xf32>
    %cst_57 = arith.constant dense<0.000000e+00> : vector<8x256xf32>
    %101 = tpu.matmul %100, %99, %cst_57 {dimension_numbers = #tpu.dot_dimension_numbers<[1], [1], [0], [0], [0, 0, 1, 0], [], []>} : vector<8x128xf32>, vector<256x128xf32>, vector<8x256xf32> -> vector<8x256xf32>
    %102 = math.absf %101 : vector<8x256xf32>
    %cst_58 = arith.constant 0.000000e+00 : f32
    %103 = vector.broadcast %cst_58 : f32 to vector<8x256xf32>
    %104 = arith.subf %103, %102 : vector<8x256xf32>
    %105 = math.exp %104 : vector<8x256xf32>
    %cst_59 = arith.constant 0.000000e+00 : f32
    %106 = vector.broadcast %cst_59 : f32 to vector<8x256xf32>
    %107 = arith.cmpf oge, %101, %106 : vector<8x256xf32>
    %cst_60 = arith.constant 1.000000e+00 : f32
    %108 = vector.broadcast %cst_60 : f32 to vector<8x256xf32>
    %109 = arith.addf %108, %105 : vector<8x256xf32>
    %cst_61 = arith.constant 1.000000e+00 : f32
    %110 = vector.broadcast %cst_61 : f32 to vector<8x256xf32>
    %111 = arith.divf %110, %109 : vector<8x256xf32>
    %cst_62 = arith.constant 1.000000e+00 : f32
    %112 = vector.broadcast %cst_62 : f32 to vector<8x256xf32>
    %113 = arith.addf %112, %105 : vector<8x256xf32>
    %114 = arith.divf %105, %113 : vector<8x256xf32>
    %115 = arith.select %107, %111, %114 : vector<8x256xi1>, vector<8x256xf32>
    %c0_63 = arith.constant 0 : index
    %c0_64 = arith.constant 0 : index
    %116 = vector.load %arg10[%c0_63, %c0_64] : memref<8x256xf32, #tpu.memory_space<vmem>>, vector<8x256xf32>
    tpu.vector_store %arg10[%c0_63, %c0_64], %115 {strides = array<i32>} : memref<8x256xf32, #tpu.memory_space<vmem>>, vector<8x256xf32>,
    return
  }
}

</mosaic_0001>

<llo_original>
// kernel: forward.1
$region0: #{forward.1}
  #allocation0 [shape = 'u32[]', space=smem, size = 0x4, offset = 0x4, fixed_abs, tag = 'smem constant byte address 0x4 - core index']
  #allocation1 [shape = 'u32[72,128]{1,0:T(1,128)}', space=vmem, size = 0x9000, scoped, tag = 'internal scratch']
  %s0 = inlined_call_operand.vmem [shape: f32[16,128], index: 0, kind: input, shape index: {}]
  %s1 = inlined_call_operand.vmem [shape: f32[128,128], index: 1, kind: input, shape index: {}]
  %s2 = inlined_call_operand.hbm [shape: f32[128,128], index: 2, kind: input, shape index: {}]
  %s3 = inlined_call_operand.hbm [shape: f32[128,128], index: 3, kind: input, shape index: {}]
  %s4 = inlined_call_operand.vmem [shape: f32[49,16], index: 4, kind: input, shape index: {}]
  %s5 = inlined_call_operand.vmem [shape: f32[121,49], index: 5, kind: input, shape index: {}]
  %s6 = inlined_call_operand.hbm [shape: f32[256,121], index: 6, kind: input, shape index: {}]
  %s7 = inlined_call_operand.vmem [shape: f32[8,128], index: 7, kind: input, shape index: {}]
  %s8 = inlined_call_operand.vmem [shape: f32[3,1,128], index: 8, kind: input, shape index: {}]
  %s9 = inlined_call_operand.vmem [shape: f32[3,1,128], index: 9, kind: input, shape index: {}]
  %s10 = inlined_call_operand.vmem [shape: f32[8,256], index: 10, kind: output, shape index: {}]
  %s11 = sld [smem:[#allocation0]]
  $region62: #{forward.1} parent=0
    _
  %s13 = ssub.s32 1, %s11
  %s14 = scalar_select 0, %s13, %s11
  $region1: #{forward.1} parent=0
    #allocation2 [shape = 'u8[65536]{0}', space=vmem, size = 0x10000, scoped, tag = 'input window, operand 2, single buffered']
    #allocation3 [shape = 's32[1]{0}', space=sflag, size = 0x4, scoped, tag = 'scoped memory for forward.1']
    #allocation4 [shape = 'u8[65536]{0}', space=vmem, size = 0x10000, scoped, tag = 'input window, operand 3, single buffered']
    #allocation5 [shape = 's32[1]{0}', space=sflag, size = 0x4, scoped, tag = 'scoped memory for forward.1']
    #allocation6 [shape = 'u8[131072]{0}', space=vmem, size = 0x20000, scoped, tag = 'input window, operand 6, single buffered']
    %15 = vsyncpa [#allocation3], 0
    %16 = vsyncpa [#allocation5], 0
    // Predicated region
    $region2: #{forward.1} parent=1 // pred_check
      _
    $region3: #{forward.1} parent=1 // pred_check_branch
      %18 = sbr.rel (0) target = $region5
    $region4: #{forward.1} parent=1 // pred_region
      _
    $region5: #{forward.1} parent=1 // pred_fallthru
      _
    // Predicated region
    $region6: #{forward.1} parent=1 // pred_check
      _
    $region7: #{forward.1} parent=1 // pred_check_branch
      %20 = sbr.rel (0) target = $region9
    $region8: #{forward.1} parent=1 // pred_region
      _
    $region9: #{forward.1} parent=1 // pred_fallthru
      _
    // Predicated region
    $region10: #{forward.1} parent=1 // pred_check
      _
    $region11: #{forward.1} parent=1 // pred_check_branch
      %22 = sbr.rel (0) target = $region13
    $region12: #{forward.1} parent=1 // pred_region
      %24 = vsyncadd [#allocation3], 0
      %s25 = sshll.u32 %s2, 4
      %s26 = int_to_ptr.hbm [resolvable:$true] %s25
      %s27 = sshll.u32 [#allocation2], 4
      %s28 = int_to_ptr.vmem [resolvable:$true] %s27
      %33 = dma.hbm_to_vmem [thread:$0]  %s26, 2048, %s28, [#allocation3], 128, 128, 8
    $region13: #{forward.1} parent=1 // pred_fallthru
      _
    // Predicated region
    $region14: #{forward.1} parent=1 // pred_check
      _
    $region15: #{forward.1} parent=1 // pred_check_branch
      %35 = sbr.rel (0) target = $region17
    $region16: #{forward.1} parent=1 // pred_region
      %37 = vsyncadd [#allocation5], 0
      %s38 = sshll.u32 %s3, 4
      %s39 = int_to_ptr.hbm [resolvable:$true] %s38
      %s40 = sshll.u32 [#allocation4], 4
      %s41 = int_to_ptr.vmem [resolvable:$true] %s40
      %46 = dma.hbm_to_vmem [thread:$0]  %s39, 2048, %s41, [#allocation5], 128, 128, 8
    $region17: #{forward.1} parent=1 // pred_fallthru
      _
    // Predicated region
    $region18: #{forward.1} parent=1 // pred_check
      _
    $region19: #{forward.1} parent=1 // pred_check_branch
      %48 = sbr.rel (0) target = $region21
    $region20: #{forward.1} parent=1 // pred_region
      _
    $region21: #{forward.1} parent=1 // pred_fallthru
      _
    // Predicated region
    $region22: #{forward.1} parent=1 // pred_check
      _
    $region23: #{forward.1} parent=1 // pred_check_branch
      %50 = sbr.rel (0) target = $region25
    $region24: #{forward.1} parent=1 // pred_region
      _
    $region25: #{forward.1} parent=1 // pred_fallthru
      _
    // Predicated region
    $region26: #{forward.1} parent=1 // pred_check
      _
    $region27: #{forward.1} parent=1 // pred_check_branch
      %52 = sbr.rel (0) target = $region29
    $region28: #{forward.1} parent=1 // pred_region
      %54 = vsyncadd [#allocation5], 0
      %s55 = sshll.u32 %s6, 4
      %s56 = int_to_ptr.hbm [resolvable:$true] %s55
      %s57 = sshll.u32 [#allocation6], 4
      %s58 = int_to_ptr.vmem [resolvable:$true] %s57
      %63 = dma.hbm_to_vmem [thread:$0]  %s56, 4096, %s58, [#allocation5], 128, 128, 8
    $region29: #{forward.1} parent=1 // pred_fallthru
      _
    // Predicated region
    $region30: #{forward.1} parent=1 // pred_check
      _
    $region31: #{forward.1} parent=1 // pred_check_branch
      %65 = sbr.rel (0) target = $region33
    $region32: #{forward.1} parent=1 // pred_region
      _
    $region33: #{forward.1} parent=1 // pred_fallthru
      _
    // Predicated region
    $region34: #{forward.1} parent=1 // pred_check
      _
    $region35: #{forward.1} parent=1 // pred_check_branch
      %67 = sbr.rel (0) target = $region37
    $region36: #{forward.1} parent=1 // pred_region
      _
    $region37: #{forward.1} parent=1 // pred_fallthru
      _
    // Predicated region
    $region38: #{forward.1} parent=1 // pred_check
      _
    $region39: #{forward.1} parent=1 // pred_check_branch
      %69 = sbr.rel (0) target = $region41
    $region40: #{forward.1} parent=1 // pred_region
      _
    $region41: #{forward.1} parent=1 // pred_fallthru
      _
    // Predicated region
    $region42: #{forward.1} parent=1 // pred_check
      _
    $region43: #{forward.1} parent=1 // pred_check_branch
      %71 = sbr.rel (0) target = $region45
    $region44: #{forward.1} parent=1 // pred_region
      %73 = dma.done [#allocation3], 2048
    $region45: #{forward.1} parent=1 // pred_fallthru
      _
    // Predicated region
    $region46: #{forward.1} parent=1 // pred_check
      _
    $region47: #{forward.1} parent=1 // pred_check_branch
      %75 = sbr.rel (0) target = $region49
    $region48: #{forward.1} parent=1 // pred_region
      %77 = dma.done [#allocation5], 2048
    $region49: #{forward.1} parent=1 // pred_fallthru
      _
    // Predicated region
    $region50: #{forward.1} parent=1 // pred_check
      _
    $region51: #{forward.1} parent=1 // pred_check_branch
      %79 = sbr.rel (0) target = $region53
    $region52: #{forward.1} parent=1 // pred_region
      %81 = dma.done [#allocation5], 4096
    $region53: #{forward.1} parent=1 // pred_fallthru
      _
    %v82 = vld [vmem:[%s0] sm:$0xff]
    %v83 = vld [vmem:[%s0 + $0x8] sm:$0xff]
    %v84 = vld [vmem:[%s1] sm:$0xff]
    %v85 = vld [vmem:[%s1 + $0x8] sm:$0xff]
    %v86 = vld [vmem:[%s1 + $0x10] sm:$0xff]
    %v87 = vld [vmem:[%s1 + $0x18] sm:$0xff]
    %v88 = vld [vmem:[%s1 + $0x20] sm:$0xff]
    %v89 = vld [vmem:[%s1 + $0x28] sm:$0xff]
    %v90 = vld [vmem:[%s1 + $0x30] sm:$0xff]
    %v91 = vld [vmem:[%s1 + $0x38] sm:$0xff]
    %v92 = vld [vmem:[%s1 + $0x40] sm:$0xff]
    %v93 = vld [vmem:[%s1 + $0x48] sm:$0xff]
    %v94 = vld [vmem:[%s1 + $0x50] sm:$0xff]
    %v95 = vld [vmem:[%s1 + $0x58] sm:$0xff]
    %v96 = vld [vmem:[%s1 + $0x60] sm:$0xff]
    %v97 = vld [vmem:[%s1 + $0x68] sm:$0xff]
    %v98 = vld [vmem:[%s1 + $0x70] sm:$0xff]
    %v99 = vld [vmem:[%s1 + $0x78] sm:$0xff]
    %100 = vmatpush.msra.mxu0 %v99
    %101 = vmatpush.msra.mxu0 %v98
    %102 = vmatpush.msra.mxu0 %v97
    %103 = vmatpush.msra.mxu0 %v96
    %104 = vmatpush.msra.mxu0 %v95
    %105 = vmatpush.msra.mxu0 %v94
    %106 = vmatpush.msra.mxu0 %v93
    %107 = vmatpush.msra.mxu0 %v92
    %108 = vmatpush.msra.mxu0 %v91
    %109 = vmatpush.msra.mxu0 %v90
    %110 = vmatpush.msra.mxu0 %v89
    %111 = vmatpush.msra.mxu0 %v88
    %112 = vmatpush.msra.mxu0 %v87
    %113 = vmatpush.msra.mxu0 %v86
    %114 = vmatpush.msra.mxu0 %v85
    %115 = vmatpush.msra.mxu0 %v84
    %116 = vmatmul.f32.gmra.mxu0 %v82
    %v117 = vpop.f32.mrf.mxu0
    %v118 = vadd.f32 0.0, %v117
    %119 = vmatmul.f32.gmra.mxu0 %v83
    %v120 = vpop.f32.mrf.mxu0
    %v121 = vadd.f32 0.0, %v120
    %122 = vdwg.mxu0
    %v123 = vld [vmem:[%s4] sm:$0xff]
    %v124 = vld [vmem:[%s4 + $0x8] sm:$0xff]
    %v125 = vld [vmem:[%s4 + $0x10] sm:$0xff]
    %v126 = vld [vmem:[%s4 + $0x18] sm:$0xff]
    %v127 = vld [vmem:[%s4 + $0x20] sm:$0xff]
    %v128 = vld [vmem:[%s4 + $0x28] sm:$0xff]
    %v129 = vld [vmem:[%s4 + $0x30] sm:$0x1]
    %vm130 = vcmask 130048
    %v132 = vsel %vm130, %v123, 0
    %v135 = vsel %vm130, %v124, 0
    %v138 = vsel %vm130, %v125, 0
    %v141 = vsel %vm130, %v126, 0
    %v144 = vsel %vm130, %v127, 0
    %v147 = vsel %vm130, %v128, 0
    %v150 = vsel %vm130, %v129, 0
    %152 = vmatpush.msra.mxu0 0.0
    %153 = vmatpush.msra.mxu0 0.0
    %154 = vmatpush.msra.mxu0 0.0
    %155 = vmatpush.msra.mxu0 0.0
    %156 = vmatpush.msra.mxu0 0.0
    %157 = vmatpush.msra.mxu0 0.0
    %158 = vmatpush.msra.mxu0 0.0
    %159 = vmatpush.msra.mxu0 0.0
    %160 = vmatpush.msra.mxu0 0.0
    %161 = vmatpush.msra.mxu0 0.0
    %162 = vmatpush.msra.mxu0 0.0
    %163 = vmatpush.msra.mxu0 0.0
    %164 = vmatpush.msra.mxu0 0.0
    %165 = vmatpush.msra.mxu0 0.0
    %166 = vmatpush.msra.mxu0 %v121
    %167 = vmatpush.msra.mxu0 %v118
    %168 = vmatmul.f32.gmra.mxu0 %v132
    %v169 = vpop.f32.mrf.mxu0
    %v170 = vadd.f32 0.0, %v169
    %171 = vmatmul.f32.gmra.mxu0 %v135
    %v172 = vpop.f32.mrf.mxu0
    %v173 = vadd.f32 0.0, %v172
    %174 = vmatmul.f32.gmra.mxu0 %v138
    %v175 = vpop.f32.mrf.mxu0
    %v176 = vadd.f32 0.0, %v175
    %177 = vmatmul.f32.gmra.mxu0 %v141
    %v178 = vpop.f32.mrf.mxu0
    %v179 = vadd.f32 0.0, %v178
    %180 = vmatmul.f32.gmra.mxu0 %v144
    %v181 = vpop.f32.mrf.mxu0
    %v182 = vadd.f32 0.0, %v181
    %183 = vmatmul.f32.gmra.mxu0 %v147
    %v184 = vpop.f32.mrf.mxu0
    %v185 = vadd.f32 0.0, %v184
    %186 = vmatmul.f32.gmra.mxu0 %v150
    %v187 = vpop.f32.mrf.mxu0
    %v188 = vadd.f32 0.0, %v187
    %189 = vdwg.mxu0
    %v190 = vmax.f32 %v170, 0.0
    %v191 = vmax.f32 %v173, 0.0
    %v192 = vmax.f32 %v176, 0.0
    %v193 = vmax.f32 %v179, 0.0
    %v194 = vmax.f32 %v182, 0.0
    %v195 = vmax.f32 %v185, 0.0
    %v196 = vmax.f32 %v188, 0.0
    %v197 = vadd.f32 %v190, %v191
    %v198 = vadd.f32 %v197, %v192
    %v199 = vadd.f32 %v198, %v193
    %v200 = vadd.f32 %v199, %v194
    %v201 = vadd.f32 %v200, %v195
    %vm202 = vcmask 1040384
    %v203 = vsel %vm202, %v196, 0.0
    %v204 = vadd.f32 %v201, %v203
    %v205 = vrot.slane %v204, 4
    %v206 = vadd.f32 %v204, %v205
    %v207 = vrot.slane %v206, 2
    %v208 = vadd.f32 %v206, %v207
    %v209 = vrot.slane %v208, 1
    %v210 = vadd.f32 %v208, %v209
    %v211 = vmul.f32 %v210, 0.020408163
    %v212 = vmul.f32 %v190, %v190
    %v213 = vmul.f32 %v191, %v191
    %v214 = vmul.f32 %v192, %v192
    %v215 = vmul.f32 %v193, %v193
    %v216 = vmul.f32 %v194, %v194
    %v217 = vmul.f32 %v195, %v195
    %v218 = vmul.f32 %v196, %v196
    %v219 = vadd.f32 %v212, %v213
    %v220 = vadd.f32 %v219, %v214
    %v221 = vadd.f32 %v220, %v215
    %v222 = vadd.f32 %v221, %v216
    %v223 = vadd.f32 %v222, %v217
    %v224 = vsel %vm202, %v218, 0.0
    %v225 = vadd.f32 %v223, %v224
    %v226 = vrot.slane %v225, 4
    %v227 = vadd.f32 %v225, %v226
    %v228 = vrot.slane %v227, 2
    %v229 = vadd.f32 %v227, %v228
    %v230 = vrot.slane %v229, 1
    %v231 = vadd.f32 %v229, %v230
    %v232 = vmul.f32 %v231, 0.020408163
    %v233 = vmul.f32 %v211, %v211
    %v234 = vsub.f32 %v232, %v233
    %v235 = vmax.f32 %v234, 0.0
    %v236 = vadd.f32 %v235, 1e-05
    %v237 = vrsqrt.pop %v236
    %v238 = vmul.f32 %v237, %v236
    %v239 = vmul.f32 %v238, %v237
    %v240 = vmul.f32 0.5, %v239
    %v241 = vsub.f32 1.5, %v240
    %v242 = vmul.f32 %v237, %v241
    %vm243 = vweird.f32 %v236
    %vm244 = vweird.f32 %v237
    %vm245 = vmor %vm243, %vm244
    %v246 = vsel %vm245, %v237, %v242
    %v247 = vld [vmem:[%s8] sm:$0x1]
    %v248 = vmul.f32 %v246, %v247
    %v249 = vld [vmem:[%s9] sm:$0x1]
    %v250 = vmul.f32 %v211, %v248
    %v251 = vsub.f32 %v249, %v250
    %v252 = vperm.slane %v248, 0
    %v253 = vmul.f32 %v190, %v252
    %v254 = vmul.f32 %v191, %v252
    %v255 = vmul.f32 %v192, %v252
    %v256 = vmul.f32 %v193, %v252
    %v257 = vmul.f32 %v194, %v252
    %v258 = vmul.f32 %v195, %v252
    %v259 = vmul.f32 %v196, %v252
    %v261 = vperm.slane %v251, 0
    %v263 = vadd.f32 %v253, %v261
    %v264 = vadd.f32 %v254, %v261
    %v265 = vadd.f32 %v255, %v261
    %v266 = vadd.f32 %v256, %v261
    %v267 = vadd.f32 %v257, %v261
    %v268 = vadd.f32 %v258, %v261
    %v269 = vadd.f32 %v259, %v261
    %v270 = vld [vmem:[#allocation2] sm:$0xff]
    %v271 = vld [vmem:[#allocation2 + $0x8] sm:$0xff]
    %v272 = vld [vmem:[#allocation2 + $0x10] sm:$0xff]
    %v273 = vld [vmem:[#allocation2 + $0x18] sm:$0xff]
    %v274 = vld [vmem:[#allocation2 + $0x20] sm:$0xff]
    %v275 = vld [vmem:[#allocation2 + $0x28] sm:$0xff]
    %v276 = vld [vmem:[#allocation2 + $0x30] sm:$0xff]
    %v277 = vld [vmem:[#allocation2 + $0x38] sm:$0xff]
    %v278 = vld [vmem:[#allocation2 + $0x40] sm:$0xff]
    %v279 = vld [vmem:[#allocation2 + $0x48] sm:$0xff]
    %v280 = vld [vmem:[#allocation2 + $0x50] sm:$0xff]
    %v281 = vld [vmem:[#allocation2 + $0x58] sm:$0xff]
    %v282 = vld [vmem:[#allocation2 + $0x60] sm:$0xff]
    %v283 = vld [vmem:[#allocation2 + $0x68] sm:$0xff]
    %v284 = vld [vmem:[#allocation2 + $0x70] sm:$0xff]
    %v285 = vld [vmem:[#allocation2 + $0x78] sm:$0xff]
    %286 = vmatpush.msra.mxu0 %v285
    %287 = vmatpush.msra.mxu0 %v284
    %288 = vmatpush.msra.mxu0 %v283
    %289 = vmatpush.msra.mxu0 %v282
    %290 = vmatpush.msra.mxu0 %v281
    %291 = vmatpush.msra.mxu0 %v280
    %292 = vmatpush.msra.mxu0 %v279
    %293 = vmatpush.msra.mxu0 %v278
    %294 = vmatpush.msra.mxu0 %v277
    %295 = vmatpush.msra.mxu0 %v276
    %296 = vmatpush.msra.mxu0 %v275
    %297 = vmatpush.msra.mxu0 %v274
    %298 = vmatpush.msra.mxu0 %v273
    %299 = vmatpush.msra.mxu0 %v272
    %300 = vmatpush.msra.mxu0 %v271
    %301 = vmatpush.msra.mxu0 %v270
    %302 = vmatmul.f32.gmra.mxu0 %v263
    %v303 = vpop.f32.mrf.mxu0
    %v304 = vadd.f32 0.0, %v303
    %305 = vmatmul.f32.gmra.mxu0 %v264
    %v306 = vpop.f32.mrf.mxu0
    %v307 = vadd.f32 0.0, %v306
    %308 = vmatmul.f32.gmra.mxu0 %v265
    %v309 = vpop.f32.mrf.mxu0
    %v310 = vadd.f32 0.0, %v309
    %311 = vmatmul.f32.gmra.mxu0 %v266
    %v312 = vpop.f32.mrf.mxu0
    %v313 = vadd.f32 0.0, %v312
    %314 = vmatmul.f32.gmra.mxu0 %v267
    %v315 = vpop.f32.mrf.mxu0
    %v316 = vadd.f32 0.0, %v315
    %317 = vmatmul.f32.gmra.mxu0 %v268
    %v318 = vpop.f32.mrf.mxu0
    %v319 = vadd.f32 0.0, %v318
    %320 = vmatmul.f32.gmra.mxu0 %v269
    %v321 = vpop.f32.mrf.mxu0
    %v322 = vadd.f32 0.0, %v321
    %323 = vdwg.mxu0
    %v324 = vld [vmem:[%s5] sm:$0xff]
    %v325 = vld [vmem:[%s5 + $0x8] sm:$0xff]
    %v326 = vld [vmem:[%s5 + $0x10] sm:$0xff]
    %v327 = vld [vmem:[%s5 + $0x18] sm:$0xff]
    %v328 = vld [vmem:[%s5 + $0x20] sm:$0xff]
    %v329 = vld [vmem:[%s5 + $0x28] sm:$0xff]
    %v330 = vld [vmem:[%s5 + $0x30] sm:$0xff]
    %v331 = vld [vmem:[%s5 + $0x38] sm:$0xff]
    %v332 = vld [vmem:[%s5 + $0x40] sm:$0xff]
    %v333 = vld [vmem:[%s5 + $0x48] sm:$0xff]
    %v334 = vld [vmem:[%s5 + $0x50] sm:$0xff]
    %v335 = vld [vmem:[%s5 + $0x58] sm:$0xff]
    %v336 = vld [vmem:[%s5 + $0x60] sm:$0xff]
    %v337 = vld [vmem:[%s5 + $0x68] sm:$0xff]
    %v338 = vld [vmem:[%s5 + $0x70] sm:$0xff]
    %v339 = vld [vmem:[%s5 + $0x78] sm:$0x1]
    %vm340 = vcmask 400384
    %v342 = vsel %vm340, %v324, 0
    %v345 = vsel %vm340, %v325, 0
    %v348 = vsel %vm340, %v326, 0
    %v351 = vsel %vm340, %v327, 0
    %v354 = vsel %vm340, %v328, 0
    %v357 = vsel %vm340, %v329, 0
    %v360 = vsel %vm340, %v330, 0
    %v363 = vsel %vm340, %v331, 0
    %v366 = vsel %vm340, %v332, 0
    %v369 = vsel %vm340, %v333, 0
    %v372 = vsel %vm340, %v334, 0
    %v375 = vsel %vm340, %v335, 0
    %v378 = vsel %vm340, %v336, 0
    %v381 = vsel %vm340, %v337, 0
    %v384 = vsel %vm340, %v338, 0
    %v387 = vsel %vm340, %v339, 0
    %v390 = vsel %vm202, %v322, 0
    %392 = vmatpush.msra.mxu0 0.0
    %393 = vmatpush.msra.mxu0 0.0
    %394 = vmatpush.msra.mxu0 0.0
    %395 = vmatpush.msra.mxu0 0.0
    %396 = vmatpush.msra.mxu0 0.0
    %397 = vmatpush.msra.mxu0 0.0
    %398 = vmatpush.msra.mxu0 0.0
    %399 = vmatpush.msra.mxu0 0.0
    %400 = vmatpush.msra.mxu0 0.0
    %401 = vmatpush.msra.mxu0 %v390
    %402 = vmatpush.msra.mxu0 %v319
    %403 = vmatpush.msra.mxu0 %v316
    %404 = vmatpush.msra.mxu0 %v313
    %405 = vmatpush.msra.mxu0 %v310
    %406 = vmatpush.msra.mxu0 %v307
    %407 = vmatpush.msra.mxu0 %v304
    %408 = vmatmul.f32.gmra.mxu0 %v342
    %v409 = vpop.f32.mrf.mxu0
    %v410 = vadd.f32 0.0, %v409
    %411 = vmatmul.f32.gmra.mxu0 %v345
    %v412 = vpop.f32.mrf.mxu0
    %v413 = vadd.f32 0.0, %v412
    %414 = vmatmul.f32.gmra.mxu0 %v348
    %v415 = vpop.f32.mrf.mxu0
    %v416 = vadd.f32 0.0, %v415
    %417 = vmatmul.f32.gmra.mxu0 %v351
    %v418 = vpop.f32.mrf.mxu0
    %v419 = vadd.f32 0.0, %v418
    %420 = vmatmul.f32.gmra.mxu0 %v354
    %v421 = vpop.f32.mrf.mxu0
    %v422 = vadd.f32 0.0, %v421
    %423 = vmatmul.f32.gmra.mxu0 %v357
    %v424 = vpop.f32.mrf.mxu0
    %v425 = vadd.f32 0.0, %v424
    %426 = vmatmul.f32.gmra.mxu0 %v360
    %v427 = vpop.f32.mrf.mxu0
    %v428 = vadd.f32 0.0, %v427
    %429 = vmatmul.f32.gmra.mxu0 %v363
    %v430 = vpop.f32.mrf.mxu0
    %v431 = vadd.f32 0.0, %v430
    %432 = vmatmul.f32.gmra.mxu0 %v366
    %v433 = vpop.f32.mrf.mxu0
    %v434 = vadd.f32 0.0, %v433
    %435 = vmatmul.f32.gmra.mxu0 %v369
    %v436 = vpop.f32.mrf.mxu0
    %v437 = vadd.f32 0.0, %v436
    %438 = vmatmul.f32.gmra.mxu0 %v372
    %v439 = vpop.f32.mrf.mxu0
    %v440 = vadd.f32 0.0, %v439
    %441 = vmatmul.f32.gmra.mxu0 %v375
    %v442 = vpop.f32.mrf.mxu0
    %v443 = vadd.f32 0.0, %v442
    %444 = vmatmul.f32.gmra.mxu0 %v378
    %v445 = vpop.f32.mrf.mxu0
    %v446 = vadd.f32 0.0, %v445
    %447 = vmatmul.f32.gmra.mxu0 %v381
    %v448 = vpop.f32.mrf.mxu0
    %v449 = vadd.f32 0.0, %v448
    %450 = vmatmul.f32.gmra.mxu0 %v384
    %v451 = vpop.f32.mrf.mxu0
    %v452 = vadd.f32 0.0, %v451
    %453 = vmatmul.f32.gmra.mxu0 %v387
    %v454 = vpop.f32.mrf.mxu0
    %v455 = vadd.f32 0.0, %v454
    %456 = vdwg.mxu0
    %v457 = vmax.f32 %v410, 0.0
    %v458 = vmax.f32 %v413, 0.0
    %v459 = vmax.f32 %v416, 0.0
    %v460 = vmax.f32 %v419, 0.0
    %v461 = vmax.f32 %v422, 0.0
    %v462 = vmax.f32 %v425, 0.0
    %v463 = vmax.f32 %v428, 0.0
    %v464 = vmax.f32 %v431, 0.0
    %v465 = vmax.f32 %v434, 0.0
    %v466 = vmax.f32 %v437, 0.0
    %v467 = vmax.f32 %v440, 0.0
    %v468 = vmax.f32 %v443, 0.0
    %v469 = vmax.f32 %v446, 0.0
    %v470 = vmax.f32 %v449, 0.0
    %v471 = vmax.f32 %v452, 0.0
    %v472 = vmax.f32 %v455, 0.0
    %v473 = vadd.f32 %v457, %v458
    %v474 = vadd.f32 %v473, %v459
    %v475 = vadd.f32 %v474, %v460
    %v476 = vadd.f32 %v475, %v461
    %v477 = vadd.f32 %v476, %v462
    %v478 = vadd.f32 %v477, %v463
    %v479 = vadd.f32 %v478, %v464
    %v480 = vadd.f32 %v479, %v465
    %v481 = vadd.f32 %v480, %v466
    %v482 = vadd.f32 %v481, %v467
    %v483 = vadd.f32 %v482, %v468
    %v484 = vadd.f32 %v483, %v469
    %v485 = vadd.f32 %v484, %v470
    %v486 = vadd.f32 %v485, %v471
    %v487 = vsel %vm202, %v472, 0.0
    %v488 = vadd.f32 %v486, %v487
    %v489 = vrot.slane %v488, 4
    %v490 = vadd.f32 %v488, %v489
    %v491 = vrot.slane %v490, 2
    %v492 = vadd.f32 %v490, %v491
    %v493 = vrot.slane %v492, 1
    %v494 = vadd.f32 %v492, %v493
    %v495 = vmul.f32 %v494, 0.008264462
    %v496 = vmul.f32 %v457, %v457
    %v497 = vmul.f32 %v458, %v458
    %v498 = vmul.f32 %v459, %v459
    %v499 = vmul.f32 %v460, %v460
    %v500 = vmul.f32 %v461, %v461
    %v501 = vmul.f32 %v462, %v462
    %v502 = vmul.f32 %v463, %v463
    %v503 = vmul.f32 %v464, %v464
    %v504 = vmul.f32 %v465, %v465
    %v505 = vmul.f32 %v466, %v466
    %v506 = vmul.f32 %v467, %v467
    %v507 = vmul.f32 %v468, %v468
    %v508 = vmul.f32 %v469, %v469
    %v509 = vmul.f32 %v470, %v470
    %v510 = vmul.f32 %v471, %v471
    %v511 = vmul.f32 %v472, %v472
    %v512 = vadd.f32 %v496, %v497
    %v513 = vadd.f32 %v512, %v498
    %v514 = vadd.f32 %v513, %v499
    %v515 = vadd.f32 %v514, %v500
    %v516 = vadd.f32 %v515, %v501
    %v517 = vadd.f32 %v516, %v502
    %v518 = vadd.f32 %v517, %v503
    %v519 = vadd.f32 %v518, %v504
    %v520 = vadd.f32 %v519, %v505
    %v521 = vadd.f32 %v520, %v506
    %v522 = vadd.f32 %v521, %v507
    %v523 = vadd.f32 %v522, %v508
    %v524 = vadd.f32 %v523, %v509
    %v525 = vadd.f32 %v524, %v510
    %v526 = vsel %vm202, %v511, 0.0
    %v527 = vadd.f32 %v525, %v526
    %v528 = vrot.slane %v527, 4
    %v529 = vadd.f32 %v527, %v528
    %v530 = vrot.slane %v529, 2
    %v531 = vadd.f32 %v529, %v530
    %v532 = vrot.slane %v531, 1
    %v533 = vadd.f32 %v531, %v532
    %v534 = vmul.f32 %v533, 0.008264462
    %v535 = vmul.f32 %v495, %v495
    %v536 = vsub.f32 %v534, %v535
    %v537 = vmax.f32 %v536, 0.0
    %v538 = vadd.f32 %v537, 1e-05
    %v539 = vrsqrt.pop %v538
    %v540 = vmul.f32 %v539, %v538
    %v541 = vmul.f32 %v540, %v539
    %v542 = vmul.f32 0.5, %v541
    %v543 = vsub.f32 1.5, %v542
    %v544 = vmul.f32 %v539, %v543
    %vm545 = vweird.f32 %v538
    %vm546 = vweird.f32 %v539
    %vm547 = vmor %vm545, %vm546
    %v548 = vsel %vm547, %v539, %v544
    %s549 = scalar_lea.vmem %s8, 1
    %v550 = vld [vmem:[%s549] sm:$0x1]
    %v551 = vmul.f32 %v548, %v550
    %s552 = scalar_lea.vmem %s9, 1
    %v553 = vld [vmem:[%s552] sm:$0x1]
    %v554 = vmul.f32 %v495, %v551
    %v555 = vsub.f32 %v553, %v554
    %v556 = vperm.slane %v551, 0
    %v557 = vmul.f32 %v457, %v556
    %v558 = vmul.f32 %v458, %v556
    %v559 = vmul.f32 %v459, %v556
    %v560 = vmul.f32 %v460, %v556
    %v561 = vmul.f32 %v461, %v556
    %v562 = vmul.f32 %v462, %v556
    %v563 = vmul.f32 %v463, %v556
    %v564 = vmul.f32 %v464, %v556
    %v565 = vmul.f32 %v465, %v556
    %v566 = vmul.f32 %v466, %v556
    %v567 = vmul.f32 %v467, %v556
    %v568 = vmul.f32 %v468, %v556
    %v569 = vmul.f32 %v469, %v556
    %v570 = vmul.f32 %v470, %v556
    %v571 = vmul.f32 %v471, %v556
    %v572 = vmul.f32 %v472, %v556
    %v574 = vperm.slane %v555, 0
    %v576 = vadd.f32 %v557, %v574
    %v577 = vadd.f32 %v558, %v574
    %v578 = vadd.f32 %v559, %v574
    %v579 = vadd.f32 %v560, %v574
    %v580 = vadd.f32 %v561, %v574
    %v581 = vadd.f32 %v562, %v574
    %v582 = vadd.f32 %v563, %v574
    %v583 = vadd.f32 %v564, %v574
    %v584 = vadd.f32 %v565, %v574
    %v585 = vadd.f32 %v566, %v574
    %v586 = vadd.f32 %v567, %v574
    %v587 = vadd.f32 %v568, %v574
    %v588 = vadd.f32 %v569, %v574
    %v589 = vadd.f32 %v570, %v574
    %v590 = vadd.f32 %v571, %v574
    %v591 = vadd.f32 %v572, %v574
    %v592 = vld [vmem:[#allocation4] sm:$0xff]
    %v593 = vld [vmem:[#allocation4 + $0x8] sm:$0xff]
    %v594 = vld [vmem:[#allocation4 + $0x10] sm:$0xff]
    %v595 = vld [vmem:[#allocation4 + $0x18] sm:$0xff]
    %v596 = vld [vmem:[#allocation4 + $0x20] sm:$0xff]
    %v597 = vld [vmem:[#allocation4 + $0x28] sm:$0xff]
    %v598 = vld [vmem:[#allocation4 + $0x30] sm:$0xff]
    %v599 = vld [vmem:[#allocation4 + $0x38] sm:$0xff]
    %v600 = vld [vmem:[#allocation4 + $0x40] sm:$0xff]
    %v601 = vld [vmem:[#allocation4 + $0x48] sm:$0xff]
    %v602 = vld [vmem:[#allocation4 + $0x50] sm:$0xff]
    %v603 = vld [vmem:[#allocation4 + $0x58] sm:$0xff]
    %v604 = vld [vmem:[#allocation4 + $0x60] sm:$0xff]
    %v605 = vld [vmem:[#allocation4 + $0x68] sm:$0xff]
    %v606 = vld [vmem:[#allocation4 + $0x70] sm:$0xff]
    %v607 = vld [vmem:[#allocation4 + $0x78] sm:$0xff]
    %608 = vmatpush.msra.mxu0 %v607
    %609 = vmatpush.msra.mxu0 %v606
    %610 = vmatpush.msra.mxu0 %v605
    %611 = vmatpush.msra.mxu0 %v604
    %612 = vmatpush.msra.mxu0 %v603
    %613 = vmatpush.msra.mxu0 %v602
    %614 = vmatpush.msra.mxu0 %v601
    %615 = vmatpush.msra.mxu0 %v600
    %616 = vmatpush.msra.mxu0 %v599
    %617 = vmatpush.msra.mxu0 %v598
    %618 = vmatpush.msra.mxu0 %v597
    %619 = vmatpush.msra.mxu0 %v596
    %620 = vmatpush.msra.mxu0 %v595
    %621 = vmatpush.msra.mxu0 %v594
    %622 = vmatpush.msra.mxu0 %v593
    %623 = vmatpush.msra.mxu0 %v592
    %624 = vmatmul.f32.gmra.mxu0 %v576
    %v625 = vpop.f32.mrf.mxu0
    %v626 = vadd.f32 0.0, %v625
    %627 = vmatmul.f32.gmra.mxu0 %v577
    %v628 = vpop.f32.mrf.mxu0
    %v629 = vadd.f32 0.0, %v628
    %630 = vmatmul.f32.gmra.mxu0 %v578
    %v631 = vpop.f32.mrf.mxu0
    %v632 = vadd.f32 0.0, %v631
    %633 = vmatmul.f32.gmra.mxu0 %v579
    %v634 = vpop.f32.mrf.mxu0
    %v635 = vadd.f32 0.0, %v634
    %636 = vmatmul.f32.gmra.mxu0 %v580
    %v637 = vpop.f32.mrf.mxu0
    %v638 = vadd.f32 0.0, %v637
    %639 = vmatmul.f32.gmra.mxu0 %v581
    %v640 = vpop.f32.mrf.mxu0
    %v641 = vadd.f32 0.0, %v640
    %642 = vmatmul.f32.gmra.mxu0 %v582
    %v643 = vpop.f32.mrf.mxu0
    %v644 = vadd.f32 0.0, %v643
    %645 = vmatmul.f32.gmra.mxu0 %v583
    %v646 = vpop.f32.mrf.mxu0
    %v647 = vadd.f32 0.0, %v646
    %648 = vmatmul.f32.gmra.mxu0 %v584
    %v649 = vpop.f32.mrf.mxu0
    %v650 = vadd.f32 0.0, %v649
    %651 = vmatmul.f32.gmra.mxu0 %v585
    %v652 = vpop.f32.mrf.mxu0
    %v653 = vadd.f32 0.0, %v652
    %654 = vmatmul.f32.gmra.mxu0 %v586
    %v655 = vpop.f32.mrf.mxu0
    %v656 = vadd.f32 0.0, %v655
    %657 = vmatmul.f32.gmra.mxu0 %v587
    %v658 = vpop.f32.mrf.mxu0
    %v659 = vadd.f32 0.0, %v658
    %660 = vmatmul.f32.gmra.mxu0 %v588
    %v661 = vpop.f32.mrf.mxu0
    %v662 = vadd.f32 0.0, %v661
    %663 = vmatmul.f32.gmra.mxu0 %v589
    %v664 = vpop.f32.mrf.mxu0
    %v665 = vadd.f32 0.0, %v664
    %666 = vmatmul.f32.gmra.mxu0 %v590
    %v667 = vpop.f32.mrf.mxu0
    %v668 = vadd.f32 0.0, %v667
    %669 = vmatmul.f32.gmra.mxu0 %v591
    %v670 = vpop.f32.mrf.mxu0
    %v671 = vadd.f32 0.0, %v670
    %672 = vdwg.mxu0
    %v673 = vld [vmem:[#allocation6] sm:$0xff]
    %v674 = vld [vmem:[#allocation6 + $0x8] sm:$0xff]
    %v675 = vld [vmem:[#allocation6 + $0x10] sm:$0xff]
    %v676 = vld [vmem:[#allocation6 + $0x18] sm:$0xff]
    %v677 = vld [vmem:[#allocation6 + $0x20] sm:$0xff]
    %v678 = vld [vmem:[#allocation6 + $0x28] sm:$0xff]
    %v679 = vld [vmem:[#allocation6 + $0x30] sm:$0xff]
    %v680 = vld [vmem:[#allocation6 + $0x38] sm:$0xff]
    %v681 = vld [vmem:[#allocation6 + $0x40] sm:$0xff]
    %v682 = vld [vmem:[#allocation6 + $0x48] sm:$0xff]
    %v683 = vld [vmem:[#allocation6 + $0x50] sm:$0xff]
    %v684 = vld [vmem:[#allocation6 + $0x58] sm:$0xff]
    %v685 = vld [vmem:[#allocation6 + $0x60] sm:$0xff]
    %v686 = vld [vmem:[#allocation6 + $0x68] sm:$0xff]
    %v687 = vld [vmem:[#allocation6 + $0x70] sm:$0xff]
    %v688 = vld [vmem:[#allocation6 + $0x78] sm:$0xff]
    %v689 = vld [vmem:[#allocation6 + $0x80] sm:$0xff]
    %v690 = vld [vmem:[#allocation6 + $0x88] sm:$0xff]
    %v691 = vld [vmem:[#allocation6 + $0x90] sm:$0xff]
    %v692 = vld [vmem:[#allocation6 + $0x98] sm:$0xff]
    %v693 = vld [vmem:[#allocation6 + $0xa0] sm:$0xff]
    %v694 = vld [vmem:[#allocation6 + $0xa8] sm:$0xff]
    %v695 = vld [vmem:[#allocation6 + $0xb0] sm:$0xff]
    %v696 = vld [vmem:[#allocation6 + $0xb8] sm:$0xff]
    %v697 = vld [vmem:[#allocation6 + $0xc0] sm:$0xff]
    %v698 = vld [vmem:[#allocation6 + $0xc8] sm:$0xff]
    %v699 = vld [vmem:[#allocation6 + $0xd0] sm:$0xff]
    %v700 = vld [vmem:[#allocation6 + $0xd8] sm:$0xff]
    %v701 = vld [vmem:[#allocation6 + $0xe0] sm:$0xff]
    %v702 = vld [vmem:[#allocation6 + $0xe8] sm:$0xff]
    %v703 = vld [vmem:[#allocation6 + $0xf0] sm:$0xff]
    %v704 = vld [vmem:[#allocation6 + $0xf8] sm:$0xff]
    %vm705 = vcmask 990208
    %v707 = vsel %vm705, %v673, 0
    %v710 = vsel %vm705, %v674, 0
    %v713 = vsel %vm705, %v675, 0
    %v716 = vsel %vm705, %v676, 0
    %v719 = vsel %vm705, %v677, 0
    %v722 = vsel %vm705, %v678, 0
    %v725 = vsel %vm705, %v679, 0
    %v728 = vsel %vm705, %v680, 0
    %v731 = vsel %vm705, %v681, 0
    %v734 = vsel %vm705, %v682, 0
    %v737 = vsel %vm705, %v683, 0
    %v740 = vsel %vm705, %v684, 0
    %v743 = vsel %vm705, %v685, 0
    %v746 = vsel %vm705, %v686, 0
    %v749 = vsel %vm705, %v687, 0
    %v752 = vsel %vm705, %v688, 0
    %v755 = vsel %vm705, %v689, 0
    %v758 = vsel %vm705, %v690, 0
    %v761 = vsel %vm705, %v691, 0
    %v764 = vsel %vm705, %v692, 0
    %v767 = vsel %vm705, %v693, 0
    %v770 = vsel %vm705, %v694, 0
    %v773 = vsel %vm705, %v695, 0
    %v776 = vsel %vm705, %v696, 0
    %v779 = vsel %vm705, %v697, 0
    %v782 = vsel %vm705, %v698, 0
    %v785 = vsel %vm705, %v699, 0
    %v788 = vsel %vm705, %v700, 0
    %v791 = vsel %vm705, %v701, 0
    %v794 = vsel %vm705, %v702, 0
    %v797 = vsel %vm705, %v703, 0
    %v800 = vsel %vm705, %v704, 0
    %v803 = vsel %vm202, %v671, 0
    %805 = vmatpush.msra.mxu0 %v803
    %806 = vmatpush.msra.mxu0 %v668
    %807 = vmatpush.msra.mxu0 %v665
    %808 = vmatpush.msra.mxu0 %v662
    %809 = vmatpush.msra.mxu0 %v659
    %810 = vmatpush.msra.mxu0 %v656
    %811 = vmatpush.msra.mxu0 %v653
    %812 = vmatpush.msra.mxu0 %v650
    %813 = vmatpush.msra.mxu0 %v647
    %814 = vmatpush.msra.mxu0 %v644
    %815 = vmatpush.msra.mxu0 %v641
    %816 = vmatpush.msra.mxu0 %v638
    %817 = vmatpush.msra.mxu0 %v635
    %818 = vmatpush.msra.mxu0 %v632
    %819 = vmatpush.msra.mxu0 %v629
    %820 = vmatpush.msra.mxu0 %v626
    %821 = vmatmul.f32.gmra.mxu0 %v707
    %v822 = vpop.f32.mrf.mxu0
    %v823 = vadd.f32 0.0, %v822
    %824 = vmatmul.f32.gmra.mxu0 %v710
    %v825 = vpop.f32.mrf.mxu0
    %v826 = vadd.f32 0.0, %v825
    %827 = vmatmul.f32.gmra.mxu0 %v713
    %v828 = vpop.f32.mrf.mxu0
    %v829 = vadd.f32 0.0, %v828
    %830 = vmatmul.f32.gmra.mxu0 %v716
    %v831 = vpop.f32.mrf.mxu0
    %v832 = vadd.f32 0.0, %v831
    %833 = vmatmul.f32.gmra.mxu0 %v719
    %v834 = vpop.f32.mrf.mxu0
    %v835 = vadd.f32 0.0, %v834
    %836 = vmatmul.f32.gmra.mxu0 %v722
    %v837 = vpop.f32.mrf.mxu0
    %v838 = vadd.f32 0.0, %v837
    %839 = vmatmul.f32.gmra.mxu0 %v725
    %v840 = vpop.f32.mrf.mxu0
    %v841 = vadd.f32 0.0, %v840
    %842 = vmatmul.f32.gmra.mxu0 %v728
    %v843 = vpop.f32.mrf.mxu0
    %v844 = vadd.f32 0.0, %v843
    %845 = vmatmul.f32.gmra.mxu0 %v731
    %v846 = vpop.f32.mrf.mxu0
    %v847 = vadd.f32 0.0, %v846
    %848 = vmatmul.f32.gmra.mxu0 %v734
    %v849 = vpop.f32.mrf.mxu0
    %v850 = vadd.f32 0.0, %v849
    %851 = vmatmul.f32.gmra.mxu0 %v737
    %v852 = vpop.f32.mrf.mxu0
    %v853 = vadd.f32 0.0, %v852
    %854 = vmatmul.f32.gmra.mxu0 %v740
    %v855 = vpop.f32.mrf.mxu0
    %v856 = vadd.f32 0.0, %v855
    %857 = vmatmul.f32.gmra.mxu0 %v743
    %v858 = vpop.f32.mrf.mxu0
    %v859 = vadd.f32 0.0, %v858
    %860 = vmatmul.f32.gmra.mxu0 %v746
    %v861 = vpop.f32.mrf.mxu0
    %v862 = vadd.f32 0.0, %v861
    %863 = vmatmul.f32.gmra.mxu0 %v749
    %v864 = vpop.f32.mrf.mxu0
    %v865 = vadd.f32 0.0, %v864
    %866 = vmatmul.f32.gmra.mxu0 %v752
    %v867 = vpop.f32.mrf.mxu0
    %v868 = vadd.f32 0.0, %v867
    %869 = vmatmul.f32.gmra.mxu0 %v755
    %v870 = vpop.f32.mrf.mxu0
    %v871 = vadd.f32 0.0, %v870
    %872 = vmatmul.f32.gmra.mxu0 %v758
    %v873 = vpop.f32.mrf.mxu0
    %v874 = vadd.f32 0.0, %v873
    %875 = vmatmul.f32.gmra.mxu0 %v761
    %v876 = vpop.f32.mrf.mxu0
    %v877 = vadd.f32 0.0, %v876
    %878 = vmatmul.f32.gmra.mxu0 %v764
    %v879 = vpop.f32.mrf.mxu0
    %v880 = vadd.f32 0.0, %v879
    %881 = vmatmul.f32.gmra.mxu0 %v767
    %v882 = vpop.f32.mrf.mxu0
    %v883 = vadd.f32 0.0, %v882
    %884 = vmatmul.f32.gmra.mxu0 %v770
    %v885 = vpop.f32.mrf.mxu0
    %v886 = vadd.f32 0.0, %v885
    %887 = vmatmul.f32.gmra.mxu0 %v773
    %v888 = vpop.f32.mrf.mxu0
    %v889 = vadd.f32 0.0, %v888
    %890 = vmatmul.f32.gmra.mxu0 %v776
    %v891 = vpop.f32.mrf.mxu0
    %v892 = vadd.f32 0.0, %v891
    %893 = vmatmul.f32.gmra.mxu0 %v779
    %v894 = vpop.f32.mrf.mxu0
    %v895 = vadd.f32 0.0, %v894
    %896 = vmatmul.f32.gmra.mxu0 %v782
    %v897 = vpop.f32.mrf.mxu0
    %v898 = vadd.f32 0.0, %v897
    %899 = vmatmul.f32.gmra.mxu0 %v785
    %v900 = vpop.f32.mrf.mxu0
    %v901 = vadd.f32 0.0, %v900
    %902 = vmatmul.f32.gmra.mxu0 %v788
    %v903 = vpop.f32.mrf.mxu0
    %v904 = vadd.f32 0.0, %v903
    %905 = vmatmul.f32.gmra.mxu0 %v791
    %v906 = vpop.f32.mrf.mxu0
    %v907 = vadd.f32 0.0, %v906
    %908 = vmatmul.f32.gmra.mxu0 %v794
    %v909 = vpop.f32.mrf.mxu0
    %v910 = vadd.f32 0.0, %v909
    %911 = vmatmul.f32.gmra.mxu0 %v797
    %v912 = vpop.f32.mrf.mxu0
    %v913 = vadd.f32 0.0, %v912
    %914 = vmatmul.f32.gmra.mxu0 %v800
    %v915 = vpop.f32.mrf.mxu0
    %v916 = vadd.f32 0.0, %v915
    %917 = vdwg.mxu0
    %v918 = vmax.f32 %v823, 0.0
    %v919 = vmax.f32 %v826, 0.0
    %v920 = vmax.f32 %v829, 0.0
    %v921 = vmax.f32 %v832, 0.0
    %v922 = vmax.f32 %v835, 0.0
    %v923 = vmax.f32 %v838, 0.0
    %v924 = vmax.f32 %v841, 0.0
    %v925 = vmax.f32 %v844, 0.0
    %v926 = vmax.f32 %v847, 0.0
    %v927 = vmax.f32 %v850, 0.0
    %v928 = vmax.f32 %v853, 0.0
    %v929 = vmax.f32 %v856, 0.0
    %v930 = vmax.f32 %v859, 0.0
    %v931 = vmax.f32 %v862, 0.0
    %v932 = vmax.f32 %v865, 0.0
    %v933 = vmax.f32 %v868, 0.0
    %v934 = vmax.f32 %v871, 0.0
    %v935 = vmax.f32 %v874, 0.0
    %v936 = vmax.f32 %v877, 0.0
    %v937 = vmax.f32 %v880, 0.0
    %v938 = vmax.f32 %v883, 0.0
    %v939 = vmax.f32 %v886, 0.0
    %v940 = vmax.f32 %v889, 0.0
    %v941 = vmax.f32 %v892, 0.0
    %v942 = vmax.f32 %v895, 0.0
    %v943 = vmax.f32 %v898, 0.0
    %v944 = vmax.f32 %v901, 0.0
    %v945 = vmax.f32 %v904, 0.0
    %v946 = vmax.f32 %v907, 0.0
    %v947 = vmax.f32 %v910, 0.0
    %v948 = vmax.f32 %v913, 0.0
    %v949 = vmax.f32 %v916, 0.0
    %v950 = vadd.f32 %v918, %v919
    %v951 = vadd.f32 %v950, %v920
    %v952 = vadd.f32 %v951, %v921
    %v953 = vadd.f32 %v952, %v922
    %v954 = vadd.f32 %v953, %v923
    %v955 = vadd.f32 %v954, %v924
    %v956 = vadd.f32 %v955, %v925
    %v957 = vadd.f32 %v956, %v926
    %v958 = vadd.f32 %v957, %v927
    %v959 = vadd.f32 %v958, %v928
    %v960 = vadd.f32 %v959, %v929
    %v961 = vadd.f32 %v960, %v930
    %v962 = vadd.f32 %v961, %v931
    %v963 = vadd.f32 %v962, %v932
    %v964 = vadd.f32 %v963, %v933
    %v965 = vadd.f32 %v964, %v934
    %v966 = vadd.f32 %v965, %v935
    %v967 = vadd.f32 %v966, %v936
    %v968 = vadd.f32 %v967, %v937
    %v969 = vadd.f32 %v968, %v938
    %v970 = vadd.f32 %v969, %v939
    %v971 = vadd.f32 %v970, %v940
    %v972 = vadd.f32 %v971, %v941
    %v973 = vadd.f32 %v972, %v942
    %v974 = vadd.f32 %v973, %v943
    %v975 = vadd.f32 %v974, %v944
    %v976 = vadd.f32 %v975, %v945
    %v977 = vadd.f32 %v976, %v946
    %v978 = vadd.f32 %v977, %v947
    %v979 = vadd.f32 %v978, %v948
    %v980 = vadd.f32 %v979, %v949
    %v981 = vrot.slane %v980, 4
    %v982 = vadd.f32 %v980, %v981
    %v983 = vrot.slane %v982, 2
    %v984 = vadd.f32 %v982, %v983
    %v985 = vrot.slane %v984, 1
    %v986 = vadd.f32 %v984, %v985
    %v987 = vmul.f32 %v986, 0.00390625
    %v988 = vmul.f32 %v918, %v918
    %v989 = vmul.f32 %v919, %v919
    %v990 = vmul.f32 %v920, %v920
    %v991 = vmul.f32 %v921, %v921
    %v992 = vmul.f32 %v922, %v922
    %v993 = vmul.f32 %v923, %v923
    %v994 = vmul.f32 %v924, %v924
    %v995 = vmul.f32 %v925, %v925
    %v996 = vmul.f32 %v926, %v926
    %v997 = vmul.f32 %v927, %v927
    %v998 = vmul.f32 %v928, %v928
    %v999 = vmul.f32 %v929, %v929
    %v1000 = vmul.f32 %v930, %v930
    %v1001 = vmul.f32 %v931, %v931
    %v1002 = vmul.f32 %v932, %v932
    %v1003 = vmul.f32 %v933, %v933
    %v1004 = vmul.f32 %v934, %v934
    %v1005 = vmul.f32 %v935, %v935
    %v1006 = vmul.f32 %v936, %v936
    %v1007 = vmul.f32 %v937, %v937
    %v1008 = vmul.f32 %v938, %v938
    %v1009 = vmul.f32 %v939, %v939
    %v1010 = vmul.f32 %v940, %v940
    %v1011 = vmul.f32 %v941, %v941
    %v1012 = vmul.f32 %v942, %v942
    %v1013 = vmul.f32 %v943, %v943
    %v1014 = vmul.f32 %v944, %v944
    %v1015 = vmul.f32 %v945, %v945
    %v1016 = vmul.f32 %v946, %v946
    %v1017 = vmul.f32 %v947, %v947
    %v1018 = vmul.f32 %v948, %v948
    %v1019 = vmul.f32 %v949, %v949
    %v1020 = vadd.f32 %v988, %v989
    %v1021 = vadd.f32 %v1020, %v990
    %v1022 = vadd.f32 %v1021, %v991
    %v1023 = vadd.f32 %v1022, %v992
    %v1024 = vadd.f32 %v1023, %v993
    %v1025 = vadd.f32 %v1024, %v994
    %v1026 = vadd.f32 %v1025, %v995
    %v1027 = vadd.f32 %v1026, %v996
    %v1028 = vadd.f32 %v1027, %v997
    %v1029 = vadd.f32 %v1028, %v998
    %v1030 = vadd.f32 %v1029, %v999
    %v1031 = vadd.f32 %v1030, %v1000
    %v1032 = vadd.f32 %v1031, %v1001
    %v1033 = vadd.f32 %v1032, %v1002
    %v1034 = vadd.f32 %v1033, %v1003
    %v1035 = vadd.f32 %v1034, %v1004
    %v1036 = vadd.f32 %v1035, %v1005
    %v1037 = vadd.f32 %v1036, %v1006
    %v1038 = vadd.f32 %v1037, %v1007
    %v1039 = vadd.f32 %v1038, %v1008
    %v1040 = vadd.f32 %v1039, %v1009
    %v1041 = vadd.f32 %v1040, %v1010
    %v1042 = vadd.f32 %v1041, %v1011
    %v1043 = vadd.f32 %v1042, %v1012
    %v1044 = vadd.f32 %v1043, %v1013
    %v1045 = vadd.f32 %v1044, %v1014
    %v1046 = vadd.f32 %v1045, %v1015
    %v1047 = vadd.f32 %v1046, %v1016
    %v1048 = vadd.f32 %v1047, %v1017
    %v1049 = vadd.f32 %v1048, %v1018
    %v1050 = vadd.f32 %v1049, %v1019
    %v1051 = vrot.slane %v1050, 4
    %v1052 = vadd.f32 %v1050, %v1051
    %v1053 = vrot.slane %v1052, 2
    %v1054 = vadd.f32 %v1052, %v1053
    %v1055 = vrot.slane %v1054, 1
    %v1056 = vadd.f32 %v1054, %v1055
    %v1057 = vmul.f32 %v1056, 0.00390625
    %v1058 = vmul.f32 %v987, %v987
    %v1059 = vsub.f32 %v1057, %v1058
    %v1060 = vmax.f32 %v1059, 0.0
    %v1061 = vadd.f32 %v1060, 1e-05
    %v1062 = vrsqrt.pop %v1061
    %v1063 = vmul.f32 %v1062, %v1061
    %v1064 = vmul.f32 %v1063, %v1062
    %v1065 = vmul.f32 0.5, %v1064
    %v1066 = vsub.f32 1.5, %v1065
    %v1067 = vmul.f32 %v1062, %v1066
    %vm1068 = vweird.f32 %v1061
    %vm1069 = vweird.f32 %v1062
    %vm1070 = vmor %vm1068, %vm1069
    %v1071 = vsel %vm1070, %v1062, %v1067
    %s1072 = scalar_lea.vmem %s8, 2
    %v1073 = vld [vmem:[%s1072] sm:$0x1]
    %v1074 = vmul.f32 %v1071, %v1073
    %s1075 = scalar_lea.vmem %s9, 2
    %v1076 = vld [vmem:[%s1075] sm:$0x1]
    %v1077 = vmul.f32 %v987, %v1074
    %v1078 = vsub.f32 %v1076, %v1077
    %v1079 = vperm.slane %v1074, 0
    %v1080 = vmul.f32 %v918, %v1079
    %v1081 = vmul.f32 %v919, %v1079
    %v1082 = vmul.f32 %v920, %v1079
    %v1083 = vmul.f32 %v921, %v1079
    %v1084 = vmul.f32 %v922, %v1079
    %v1085 = vmul.f32 %v923, %v1079
    %v1086 = vmul.f32 %v924, %v1079
    %v1087 = vmul.f32 %v925, %v1079
    %v1088 = vmul.f32 %v926, %v1079
    %v1089 = vmul.f32 %v927, %v1079
    %v1090 = vmul.f32 %v928, %v1079
    %v1091 = vmul.f32 %v929, %v1079
    %v1092 = vmul.f32 %v930, %v1079
    %v1093 = vmul.f32 %v931, %v1079
    %v1094 = vmul.f32 %v932, %v1079
    %v1095 = vmul.f32 %v933, %v1079
    %v1096 = vmul.f32 %v934, %v1079
    %v1097 = vmul.f32 %v935, %v1079
    %v1098 = vmul.f32 %v936, %v1079
    %v1099 = vmul.f32 %v937, %v1079
    %v1100 = vmul.f32 %v938, %v1079
    %v1101 = vmul.f32 %v939, %v1079
    %v1102 = vmul.f32 %v940, %v1079
    %v1103 = vmul.f32 %v941, %v1079
    %v1104 = vmul.f32 %v942, %v1079
    %v1105 = vmul.f32 %v943, %v1079
    %v1106 = vmul.f32 %v944, %v1079
    %v1107 = vmul.f32 %v945, %v1079
    %v1108 = vmul.f32 %v946, %v1079
    %v1109 = vmul.f32 %v947, %v1079
    %v1110 = vmul.f32 %v948, %v1079
    %v1111 = vmul.f32 %v949, %v1079
    %v1113 = vperm.slane %v1078, 0
    %v1115 = vadd.f32 %v1080, %v1113
    %v1116 = vadd.f32 %v1081, %v1113
    %v1117 = vadd.f32 %v1082, %v1113
    %v1118 = vadd.f32 %v1083, %v1113
    %v1119 = vadd.f32 %v1084, %v1113
    %v1120 = vadd.f32 %v1085, %v1113
    %v1121 = vadd.f32 %v1086, %v1113
    %v1122 = vadd.f32 %v1087, %v1113
    %v1123 = vadd.f32 %v1088, %v1113
    %v1124 = vadd.f32 %v1089, %v1113
    %v1125 = vadd.f32 %v1090, %v1113
    %v1126 = vadd.f32 %v1091, %v1113
    %v1127 = vadd.f32 %v1092, %v1113
    %v1128 = vadd.f32 %v1093, %v1113
    %v1129 = vadd.f32 %v1094, %v1113
    %v1130 = vadd.f32 %v1095, %v1113
    %v1131 = vadd.f32 %v1096, %v1113
    %v1132 = vadd.f32 %v1097, %v1113
    %v1133 = vadd.f32 %v1098, %v1113
    %v1134 = vadd.f32 %v1099, %v1113
    %v1135 = vadd.f32 %v1100, %v1113
    %v1136 = vadd.f32 %v1101, %v1113
    %v1137 = vadd.f32 %v1102, %v1113
    %v1138 = vadd.f32 %v1103, %v1113
    %v1139 = vadd.f32 %v1104, %v1113
    %v1140 = vadd.f32 %v1105, %v1113
    %v1141 = vadd.f32 %v1106, %v1113
    %v1142 = vadd.f32 %v1107, %v1113
    %v1143 = vadd.f32 %v1108, %v1113
    %v1144 = vadd.f32 %v1109, %v1113
    %v1145 = vadd.f32 %v1110, %v1113
    %v1146 = vadd.f32 %v1111, %v1113
    %v1147 = vld [vmem:[%s7] sm:$0xff]
    %1148 = vmatpush.xpose.msra.mxu0 %v1130
    %1149 = vmatpush.xpose.msra.mxu0 %v1129
    %1150 = vmatpush.xpose.msra.mxu0 %v1128
    %1151 = vmatpush.xpose.msra.mxu0 %v1127
    %1152 = vmatpush.xpose.msra.mxu0 %v1126
    %1153 = vmatpush.xpose.msra.mxu0 %v1125
    %1154 = vmatpush.xpose.msra.mxu0 %v1124
    %1155 = vmatpush.xpose.msra.mxu0 %v1123
    %1156 = vmatpush.xpose.msra.mxu0 %v1122
    %1157 = vmatpush.xpose.msra.mxu0 %v1121
    %1158 = vmatpush.xpose.msra.mxu0 %v1120
    %1159 = vmatpush.xpose.msra.mxu0 %v1119
    %1160 = vmatpush.xpose.msra.mxu0 %v1118
    %1161 = vmatpush.xpose.msra.mxu0 %v1117
    %1162 = vmatpush.xpose.msra.mxu0 %v1116
    %1163 = vmatpush.xpose.msra.mxu0 %v1115
    %1164 = vmatmul.f32.gmra.mxu0 %v1147
    %v1165 = vpop.f32.mrf.mxu0
    %v1166 = vadd.f32 0.0, %v1165
    %1167 = vdwg.mxu0
    %1168 = vmatpush.xpose.msra.mxu0 %v1146
    %1169 = vmatpush.xpose.msra.mxu0 %v1145
    %1170 = vmatpush.xpose.msra.mxu0 %v1144
    %1171 = vmatpush.xpose.msra.mxu0 %v1143
    %1172 = vmatpush.xpose.msra.mxu0 %v1142
    %1173 = vmatpush.xpose.msra.mxu0 %v1141
    %1174 = vmatpush.xpose.msra.mxu0 %v1140
    %1175 = vmatpush.xpose.msra.mxu0 %v1139
    %1176 = vmatpush.xpose.msra.mxu0 %v1138
    %1177 = vmatpush.xpose.msra.mxu0 %v1137
    %1178 = vmatpush.xpose.msra.mxu0 %v1136
    %1179 = vmatpush.xpose.msra.mxu0 %v1135
    %1180 = vmatpush.xpose.msra.mxu0 %v1134
    %1181 = vmatpush.xpose.msra.mxu0 %v1133
    %1182 = vmatpush.xpose.msra.mxu0 %v1132
    %1183 = vmatpush.xpose.msra.mxu0 %v1131
    %1184 = vmatmul.f32.gmra.mxu0 %v1147
    %v1185 = vpop.f32.mrf.mxu0
    %v1186 = vadd.f32 0.0, %v1185
    %1187 = vdwg.mxu0
    %v1188 = vand.u32 2147483647, %v1166
    %v1189 = vand.u32 2147483647, %v1186
    %v1190 = vsub.f32 0.0, %v1188
    %v1191 = vsub.f32 0.0, %v1189
    %v1192 = vmul.f32 %v1190, 1.442695
    %v1193 = vpow.pop %v1192
    %v1194 = vmul.f32 %v1191, 1.442695
    %v1195 = vpow.pop %v1194
    %vm1196 = vcmp.ge.f32.partialorder %v1166, 0.0
    %vm1197 = vcmp.ge.f32.partialorder %v1186, 0.0
    %v1198 = vadd.f32 %v1193, 1.0
    %v1199 = vadd.f32 %v1195, 1.0
    %v1200 = vrcp.pop %v1198
    %v1201 = vmul.f32 %v1198, %v1200
    %v1202 = vsub.f32 1.0, %v1201
    %v1203 = vmul.f32 %v1200, %v1202
    %v1204 = vadd.f32 %v1200, %v1203
    %vm1205 = vweird.f32 %v1198
    %vm1206 = vweird.f32 %v1200
    %vm1207 = vmor %vm1205, %vm1206
    %v1208 = vsel %vm1207, %v1200, %v1204
    %v1209 = vand.u32 2147483647, %v1198
    %vm1210 = vcmp.eq.f32.partialorder %v1209, 8.507059e+37
    %v1211 = vand.u32 %v1198, 2147483648
    %v1212 = vor.u32 1.1754944e-38, %v1211
    %v1213 = vsel %vm1210, %v1212, %v1208
    %v1214 = vmul.f32 1.0, %v1213
    %v1215 = vrcp.pop %v1199
    %v1216 = vmul.f32 %v1199, %v1215
    %v1217 = vsub.f32 1.0, %v1216
    %v1218 = vmul.f32 %v1215, %v1217
    %v1219 = vadd.f32 %v1215, %v1218
    %vm1220 = vweird.f32 %v1199
    %vm1221 = vweird.f32 %v1215
    %vm1222 = vmor %vm1220, %vm1221
    %v1223 = vsel %vm1222, %v1215, %v1219
    %v1224 = vand.u32 2147483647, %v1199
    %vm1225 = vcmp.eq.f32.partialorder %v1224, 8.507059e+37
    %v1226 = vand.u32 %v1199, 2147483648
    %v1227 = vor.u32 1.1754944e-38, %v1226
    %v1228 = vsel %vm1225, %v1227, %v1223
    %v1229 = vmul.f32 1.0, %v1228
    %v1230 = vmul.f32 %v1193, %v1213
    %v1231 = vmul.f32 %v1195, %v1228
    %v1232 = vsel %vm1196, %v1214, %v1230
    %v1233 = vsel %vm1197, %v1229, %v1231
    %1234 = vst [vmem:[%s10] sm:$0xff] %v1232
    %1235 = vst [vmem:[%s10 + $0x8] sm:$0xff] %v1233
    // Predicated region
    $region54: #{forward.1} parent=1 // pred_check
      _
    $region55: #{forward.1} parent=1 // pred_check_branch
      %1237 = sbr.rel (0) target = $region57
    $region56: #{forward.1} parent=1 // pred_region
      _
    $region57: #{forward.1} parent=1 // pred_fallthru
      _
    // Predicated region
    $region58: #{forward.1} parent=1 // pred_check
      _
    $region59: #{forward.1} parent=1 // pred_check_branch
      %1239 = sbr.rel (0) target = $region61
    $region60: #{forward.1} parent=1 // pred_region
      _
    $region61: #{forward.1} parent=1 // pred_fallthru
      _
    %1240 = vsyncpa [#allocation3], 1
    %1241 = vsyncpa [#allocation5], 1

</llo_original>
